<compile_context>
chip_gen: v7x
topology: tpu7x:2x2x1
jax: 0.10.0
libtpu: 0.0.40
codegen_flags: <defaults>
</compile_context>

<pallas_src>
import functools

import jax
import jax.numpy as jnp
from jax.experimental import pallas as pl
from jax.experimental.pallas import tpu as pltpu

_LANES = 128


def _round_up(x, m):
    return ((x + m - 1) // m) * m


def _dice_kernel(x_ref, t_ref, m_ref, a_ref, b_ref, c_ref, *,
                 tn, n_row, steps_per_split, unroll):
    """Streams one (rb, tn) tile of x/t/m and accumulates per-lane partials.

    The a/b/c output blocks (1, rb, 128) are resident across the innermost
    (reduction) grid axis; the cross-lane / cross-row reduction and the final
    loss math happen once, in a tiny plain-JAX epilogue.
    """
    p = pl.program_id(1)   # reduction-split (core) index
    k = pl.program_id(2)   # step within this split

    @pl.when(k == 0)
    def _():
        a_ref[...] = jnp.zeros_like(a_ref)
        b_ref[...] = jnp.zeros_like(b_ref)
        c_ref[...] = jnp.zeros_like(c_ref)

    # Global column offset of this tile and number of valid (in-bounds) lanes.
    # Only the globally-last tile can be ragged; its out-of-bounds tail in
    # VMEM is unspecified memory (may be NaN) and must be zeroed before it
    # touches any arithmetic.
    col0 = (p * steps_per_split + k) * tn
    valid = n_row - col0

    rb = a_ref.shape[1]
    lane = jax.lax.broadcasted_iota(jnp.int32, (rb, _LANES), 1)
    n_chunks = tn // _LANES

    def body(i, carry):
        a, b, c = carry
        off = pl.multiple_of(i * _LANES, _LANES)
        inb = lane < (valid - off)
        xs = x_ref[:, pl.ds(off, _LANES)].astype(jnp.float32)
        ts = t_ref[:, pl.ds(off, _LANES)].astype(jnp.float32)
        ms = m_ref[:, pl.ds(off, _LANES)].astype(jnp.float32)
        # Mask the ragged tail *before* any arithmetic (garbage may be NaN).
        xs = jnp.where(inb, xs, 0.0)
        ts = jnp.where(inb, ts, 0.0)
        ms = jnp.where(inb, ms, 0.0)
        # sigmoid(x) * m == 0.5*(tanh(0.5*x)+1)*m  -- one EUP push per element.
        xs = (jnp.tanh(xs * 0.5) + 1.0) * (0.5 * ms)
        ts = ts * ms
        return a + xs * ts, b + xs * xs, c + ts * ts

    a, b, c = jax.lax.fori_loop(
        0, n_chunks, body, (a_ref[0], b_ref[0], c_ref[0]), unroll=unroll)
    a_ref[0] = a
    b_ref[0] = b
    c_ref[0] = c


def dice_loss(inputs, target, mask, *, loss_weight=1.0, reduce=True,
              vmem_input_budget_bytes=32 * 1024 * 1024):
    """Pallas implementation of DiceLoss.forward (PyTorch reference)."""
    batch_size = inputs.shape[0]
    n = 1
    for s in inputs.shape[1:]:
        n *= s

    # Free, layout-preserving views (identical to .contiguous().view(B, -1)).
    x = inputs.reshape(batch_size, n)
    t = target.reshape(batch_size, n)
    m = mask.reshape(batch_size, n)

    # Sublane filling: split each batch row into r_split sub-rows.  Only exact
    # power-of-two divisors of N are used so the reshape remains a free view
    # (no jnp.pad / extra HBM copy).  rows is kept <= 32 so the per-chunk
    # working set stays well inside the 64-entry vreg file.
    r_split = 1
    for d in (32, 16, 8, 4, 2):
        if n % d == 0 and batch_size * d <= 32 and (n // d) >= _LANES:
            r_split = d
            break
    rows = batch_size * r_split
    n_row = n // r_split
    if r_split > 1:
        x = x.reshape(rows, n_row)
        t = t.reshape(rows, n_row)
        m = m.reshape(rows, n_row)

    # Row blocking for large batches (bounds vreg pressure per grid step).
    rb = rows
    if rows > 32:
        for cand in (32, 16, 8):
            if rows % cand == 0:
                rb = cand
                break
    nrb = rows // rb

    # Reduction tile: largest lane-aligned tile whose double-buffered input
    # streams (with sublane padding) fit the VMEM budget; capped at the
    # (lane-rounded) per-row length so tiny inputs get a single step.
    def _vmem_rows(r, itemsize):
        pack = 8 * max(1, 4 // max(1, itemsize))   # f32:8, bf16:16, int8/bool:32
        return _round_up(r, pack)

    foot = sum(_vmem_rows(rb, a.dtype.itemsize) * a.dtype.itemsize
               for a in (x, t, m))
    tn = vmem_input_budget_bytes // (2 * foot)
    tn = max(_LANES, (tn // _LANES) * _LANES)
    tn = min(tn, _round_up(n_row, _LANES))

    # Optional 2-way split of the reduction axis (uses both TensorCores on
    # v7x; a cheap sequential outer loop on single-core v5e/v6e).  tn is
    # re-derived so the split covers n_row with an even number of steps and
    # every step's block start is in bounds (no dead blocks, no clamping).
    total_steps = pl.cdiv(n_row, tn)
    n_split = 1
    steps_per_split = total_steps
    if total_steps >= 2:
        even_steps = _round_up(total_steps, 2)
        tn2 = _round_up(pl.cdiv(n_row, even_steps), _LANES)
        if (even_steps - 1) * tn2 < n_row:
            tn = tn2
            n_split = 2
            steps_per_split = even_steps // 2

    n_chunks = tn // _LANES
    unroll = 4 if n_chunks >= 4 else 1

    grid = (nrb, n_split, steps_per_split)

    def in_map(r, p, k):
        return (r, p * steps_per_split + k)

    def out_map(r, p, k):
        return (p, r, 0)

    kernel = functools.partial(
        _dice_kernel, tn=tn, n_row=n_row,
        steps_per_split=steps_per_split, unroll=unroll)
    part_shape = jax.ShapeDtypeStruct((n_split, rows, _LANES), jnp.float32)

    a_p, b_p, c_p = pl.pallas_call(
        kernel,
        out_shape=(part_shape, part_shape, part_shape),
        grid_spec=pltpu.PrefetchScalarGridSpec(
            num_scalar_prefetch=0,
            grid=grid,
            in_specs=[
                pl.BlockSpec((rb, tn), in_map),
                pl.BlockSpec((rb, tn), in_map),
                pl.BlockSpec((rb, tn), in_map),
            ],
            out_specs=[
                pl.BlockSpec((1, rb, _LANES), out_map),
                pl.BlockSpec((1, rb, _LANES), out_map),
                pl.BlockSpec((1, rb, _LANES), out_map),
            ],
        ),
        compiler_params=pltpu.CompilerParams(
            dimension_semantics=("parallel", "parallel", "arbitrary"),
            vmem_limit_bytes=48 * 1024 * 1024),
    )(x, t, m)

    # Tiny plain-JAX epilogue: fold split / lane / sub-row partials per batch.
    def fold(p):
        return p.sum(axis=(0, 2)).reshape(batch_size, r_split).sum(axis=1)

    a = fold(a_p)
    b = fold(b_p) + 0.001
    c = fold(c_p) + 0.001
    d = 2.0 * a / (b + c)
    loss = loss_weight * (1.0 - d)
    if reduce:
        loss = jnp.mean(loss)
    return loss


def _reference_dice_loss(inputs, target, mask, loss_weight=1.0, reduce=True):
    b = inputs.shape[0]
    x = jax.nn.sigmoid(inputs.astype(jnp.float32)).reshape(b, -1)
    t = target.reshape(b, -1).astype(jnp.float32)
    m = mask.reshape(b, -1).astype(jnp.float32)
    x = x * m
    t = t * m
    a = jnp.sum(x * t, axis=1)
    bb = jnp.sum(x * x, axis=1) + 0.001
    cc = jnp.sum(t * t, axis=1) + 0.001
    d = 2 * a / (bb + cc)
    loss = loss_weight * (1 - d)
    if reduce:
        loss = jnp.mean(loss)
    return loss


if __name__ == "__main__":
    key = jax.random.PRNGKey(0)
    k1, k2, k3, k4, k5, k6 = jax.random.split(key, 6)

    # Case 1: small NCHW, N divisible by 128 (exact tiles).
    B, C, H, W = 2, 4, 16, 16
    logits = jax.random.normal(k1, (B, C, H, W), dtype=jnp.float32)
    target = (jax.random.uniform(k2, (B, C, H, W)) > 0.5).astype(jnp.float32)
    mask = (jax.random.uniform(k3, (B, C, H, W)) > 0.3).astype(jnp.float32)

    out = dice_loss(logits, target, mask, loss_weight=1.0, reduce=True)
    out = jax.block_until_ready(out)
    ref = _reference_dice_loss(logits, target, mask, loss_weight=1.0, reduce=True)
    assert jnp.allclose(out, ref, atol=1e-5, rtol=1e-5), (out, ref)

    # Case 2: awkward N = 105 (exercises the in-kernel ragged-tail masking,
    # no wrapper-side padding anymore), reduce=False.
    B2, C2, H2, W2 = 3, 3, 7, 5
    logits2 = jax.random.normal(k4, (B2, C2, H2, W2), dtype=jnp.float32)
    target2 = (jax.random.uniform(k5, (B2, C2, H2, W2)) > 0.5).astype(jnp.float32)
    mask2 = (jax.random.uniform(k6, (B2, C2, H2, W2)) > 0.3).astype(jnp.float32)

    out2 = dice_loss(logits2, target2, mask2, loss_weight=0.5, reduce=False)
    out2 = jax.block_until_ready(out2)
    ref2 = _reference_dice_loss(logits2, target2, mask2, loss_weight=0.5,
                                reduce=False)
    assert jnp.allclose(out2, ref2, atol=1e-5, rtol=1e-5), (out2, ref2)

    print("KERNEL_OK")
</pallas_src>

<mosaic_0001>
module attributes {stable_mosaic.version = 11 : i64} {
  func.func @_dice_kernel(%arg0: i32, %arg1: i32, %arg2: i32, %arg3: memref<16x128xf32, #tpu.memory_space<vmem>>, %arg4: memref<16x128xf32, #tpu.memory_space<vmem>>, %arg5: memref<16x128xf32, #tpu.memory_space<vmem>>, %arg6: memref<1x16x128xf32, #tpu.memory_space<vmem>>, %arg7: memref<1x16x128xf32, #tpu.memory_space<vmem>>, %arg8: memref<1x16x128xf32, #tpu.memory_space<vmem>>) attributes {dimension_semantics = [#tpu.dimension_semantics<parallel>, #tpu.dimension_semantics<parallel>, #tpu.dimension_semantics<arbitrary>], iteration_bounds = array<i64: 1, 1, 1>, scalar_prefetch = 0 : i64, scratch_operands = 0 : i64, tpu.core_type = #tpu.core_type<tc>, window_params = [{transform_indices = @transform_0, window_bounds = array<i64: 16, 128>}, {transform_indices = @transform_1, window_bounds = array<i64: 16, 128>}, {transform_indices = @transform_2, window_bounds = array<i64: 16, 128>}, {transform_indices = @transform_3, window_bounds = array<i64: 1, 16, 128>}, {transform_indices = @transform_4, window_bounds = array<i64: 1, 16, 128>}, {transform_indices = @transform_5, window_bounds = array<i64: 1, 16, 128>}]} {
    %c0_i32 = arith.constant 0 : i32
    %0 = arith.cmpi eq, %arg2, %c0_i32 : i32
    %1 = arith.extui %0 : i1 to i32
    %c0_i32_0 = arith.constant 0 : i32
    %2 = arith.cmpi ne, %1, %c0_i32_0 : i32
    scf.if %2 {
      %cst_30 = arith.constant 0.000000e+00 : f32
      %55 = vector.broadcast %cst_30 : f32 to vector<1x16x128xf32>
      %c0_31 = arith.constant 0 : index
      %c0_32 = arith.constant 0 : index
      %c0_33 = arith.constant 0 : index
      %56 = vector.load %arg6[%c0_31, %c0_32, %c0_33] : memref<1x16x128xf32, #tpu.memory_space<vmem>>, vector<1x16x128xf32>
      tpu.vector_store %arg6[%c0_31, %c0_32, %c0_33], %55 {strides = array<i32>} : memref<1x16x128xf32, #tpu.memory_space<vmem>>, vector<1x16x128xf32>,
      %cst_34 = arith.constant 0.000000e+00 : f32
      %57 = vector.broadcast %cst_34 : f32 to vector<1x16x128xf32>
      %c0_35 = arith.constant 0 : index
      %c0_36 = arith.constant 0 : index
      %c0_37 = arith.constant 0 : index
      %58 = vector.load %arg7[%c0_35, %c0_36, %c0_37] : memref<1x16x128xf32, #tpu.memory_space<vmem>>, vector<1x16x128xf32>
      tpu.vector_store %arg7[%c0_35, %c0_36, %c0_37], %57 {strides = array<i32>} : memref<1x16x128xf32, #tpu.memory_space<vmem>>, vector<1x16x128xf32>,
      %cst_38 = arith.constant 0.000000e+00 : f32
      %59 = vector.broadcast %cst_38 : f32 to vector<1x16x128xf32>
      %c0_39 = arith.constant 0 : index
      %c0_40 = arith.constant 0 : index
      %c0_41 = arith.constant 0 : index
      %60 = vector.load %arg8[%c0_39, %c0_40, %c0_41] : memref<1x16x128xf32, #tpu.memory_space<vmem>>, vector<1x16x128xf32>
      tpu.vector_store %arg8[%c0_39, %c0_40, %c0_41], %59 {strides = array<i32>} : memref<1x16x128xf32, #tpu.memory_space<vmem>>, vector<1x16x128xf32>,
    } else {
    }
    %c1_i32 = arith.constant 1 : i32
    %3 = arith.muli %arg1, %c1_i32 : i32
    %4 = arith.addi %3, %arg2 : i32
    %c128_i32 = arith.constant 128 : i32
    %5 = arith.muli %4, %c128_i32 : i32
    %c128_i32_1 = arith.constant 128 : i32
    %6 = arith.subi %c128_i32_1, %5 : i32
    %7 = tpu.iota {dimensions = array<i32: 1>} : vector<16x128xi32>
    %c0 = arith.constant 0 : index
    %c0_2 = arith.constant 0 : index
    %c0_3 = arith.constant 0 : index
    %8 = vector.load %arg6[%c0, %c0_2, %c0_3] : memref<1x16x128xf32, #tpu.memory_space<vmem>>, vector<1x16x128xf32>
    %9 = vector.shape_cast %8 : vector<1x16x128xf32> to vector<16x128xf32>
    %c0_4 = arith.constant 0 : index
    %c0_5 = arith.constant 0 : index
    %c0_6 = arith.constant 0 : index
    %10 = vector.load %arg7[%c0_4, %c0_5, %c0_6] : memref<1x16x128xf32, #tpu.memory_space<vmem>>, vector<1x16x128xf32>
    %11 = vector.shape_cast %10 : vector<1x16x128xf32> to vector<16x128xf32>
    %c0_7 = arith.constant 0 : index
    %c0_8 = arith.constant 0 : index
    %c0_9 = arith.constant 0 : index
    %12 = vector.load %arg8[%c0_7, %c0_8, %c0_9] : memref<1x16x128xf32, #tpu.memory_space<vmem>>, vector<1x16x128xf32>
    %13 = vector.shape_cast %12 : vector<1x16x128xf32> to vector<16x128xf32>
    %c0_i32_10 = arith.constant 0 : i32
    %c128_i32_11 = arith.constant 128 : i32
    %14 = arith.muli %c0_i32_10, %c128_i32_11 : i32
    %15 = tpu.assume_multiple %14, 128 : i32
    %16 = arith.subi %6, %15 : i32
    %17 = vector.broadcast %16 : i32 to vector<16x128xi32>
    %18 = arith.cmpi slt, %7, %17 : vector<16x128xi32>
    %c0_12 = arith.constant 0 : index
    %19 = arith.index_cast %15 : i32 to index
    %20 = vector.load %arg3[%c0_12, %19] : memref<16x128xf32, #tpu.memory_space<vmem>>, vector<16x128xf32>
    %c0_13 = arith.constant 0 : index
    %21 = arith.index_cast %15 : i32 to index
    %22 = vector.load %arg4[%c0_13, %21] : memref<16x128xf32, #tpu.memory_space<vmem>>, vector<16x128xf32>
    %c0_14 = arith.constant 0 : index
    %23 = arith.index_cast %15 : i32 to index
    %24 = vector.load %arg5[%c0_14, %23] : memref<16x128xf32, #tpu.memory_space<vmem>>, vector<16x128xf32>
    %cst = arith.constant 0.000000e+00 : f32
    %25 = vector.broadcast %cst : f32 to vector<16x128xf32>
    %26 = arith.select %18, %20, %25 : vector<16x128xi1>, vector<16x128xf32>
    %cst_15 = arith.constant 0.000000e+00 : f32
    %27 = vector.broadcast %cst_15 : f32 to vector<16x128xf32>
    %28 = arith.select %18, %22, %27 : vector<16x128xi1>, vector<16x128xf32>
    %cst_16 = arith.constant 0.000000e+00 : f32
    %29 = vector.broadcast %cst_16 : f32 to vector<16x128xf32>
    %30 = arith.select %18, %24, %29 : vector<16x128xi1>, vector<16x128xf32>
    %cst_17 = arith.constant 5.000000e-01 : f32
    %31 = vector.broadcast %cst_17 : f32 to vector<16x128xf32>
    %32 = arith.mulf %26, %31 : vector<16x128xf32>
    %33 = math.tanh %32 : vector<16x128xf32>
    %cst_18 = arith.constant 1.000000e+00 : f32
    %34 = vector.broadcast %cst_18 : f32 to vector<16x128xf32>
    %35 = arith.addf %33, %34 : vector<16x128xf32>
    %cst_19 = arith.constant 5.000000e-01 : f32
    %36 = vector.broadcast %cst_19 : f32 to vector<16x128xf32>
    %37 = arith.mulf %36, %30 : vector<16x128xf32>
    %38 = arith.mulf %35, %37 : vector<16x128xf32>
    %39 = arith.mulf %28, %30 : vector<16x128xf32>
    %40 = arith.mulf %38, %39 : vector<16x128xf32>
    %41 = arith.addf %9, %40 : vector<16x128xf32>
    %42 = arith.mulf %38, %38 : vector<16x128xf32>
    %43 = arith.addf %11, %42 : vector<16x128xf32>
    %44 = arith.mulf %39, %39 : vector<16x128xf32>
    %45 = arith.addf %13, %44 : vector<16x128xf32>
    %c1_i32_20 = arith.constant 1 : i32
    %c0_21 = arith.constant 0 : index
    %c0_22 = arith.constant 0 : index
    %c0_23 = arith.constant 0 : index
    %46 = vector.load %arg6[%c0_21, %c0_22, %c0_23] : memref<1x16x128xf32, #tpu.memory_space<vmem>>, vector<1x16x128xf32>
    %47 = vector.shape_cast %46 : vector<1x16x128xf32> to vector<16x128xf32>
    %48 = vector.shape_cast %41 : vector<16x128xf32> to vector<1x16x128xf32>
    tpu.vector_store %arg6[%c0_21, %c0_22, %c0_23], %48 {strides = array<i32>} : memref<1x16x128xf32, #tpu.memory_space<vmem>>, vector<1x16x128xf32>,
    %c0_24 = arith.constant 0 : index
    %c0_25 = arith.constant 0 : index
    %c0_26 = arith.constant 0 : index
    %49 = vector.load %arg7[%c0_24, %c0_25, %c0_26] : memref<1x16x128xf32, #tpu.memory_space<vmem>>, vector<1x16x128xf32>
    %50 = vector.shape_cast %49 : vector<1x16x128xf32> to vector<16x128xf32>
    %51 = vector.shape_cast %43 : vector<16x128xf32> to vector<1x16x128xf32>
    tpu.vector_store %arg7[%c0_24, %c0_25, %c0_26], %51 {strides = array<i32>} : memref<1x16x128xf32, #tpu.memory_space<vmem>>, vector<1x16x128xf32>,
    %c0_27 = arith.constant 0 : index
    %c0_28 = arith.constant 0 : index
    %c0_29 = arith.constant 0 : index
    %52 = vector.load %arg8[%c0_27, %c0_28, %c0_29] : memref<1x16x128xf32, #tpu.memory_space<vmem>>, vector<1x16x128xf32>
    %53 = vector.shape_cast %52 : vector<1x16x128xf32> to vector<16x128xf32>
    %54 = vector.shape_cast %45 : vector<16x128xf32> to vector<1x16x128xf32>
    tpu.vector_store %arg8[%c0_27, %c0_28, %c0_29], %54 {strides = array<i32>} : memref<1x16x128xf32, #tpu.memory_space<vmem>>, vector<1x16x128xf32>,
    return
  }
  func.func @transform_0(%arg0: i32, %arg1: i32, %arg2: i32) -> (i32, i32) {
    %c1_i32 = arith.constant 1 : i32
    %0 = arith.muli %arg1, %c1_i32 : i32
    %1 = arith.addi %0, %arg2 : i32
    %c0_i32 = arith.constant 0 : i32
    return %arg0, %1 : i32, i32
  }
  func.func @transform_1(%arg0: i32, %arg1: i32, %arg2: i32) -> (i32, i32) {
    %c1_i32 = arith.constant 1 : i32
    %0 = arith.muli %arg1, %c1_i32 : i32
    %1 = arith.addi %0, %arg2 : i32
    %c0_i32 = arith.constant 0 : i32
    return %arg0, %1 : i32, i32
  }
  func.func @transform_2(%arg0: i32, %arg1: i32, %arg2: i32) -> (i32, i32) {
    %c1_i32 = arith.constant 1 : i32
    %0 = arith.muli %arg1, %c1_i32 : i32
    %1 = arith.addi %0, %arg2 : i32
    %c0_i32 = arith.constant 0 : i32
    return %arg0, %1 : i32, i32
  }
  func.func @transform_3(%arg0: i32, %arg1: i32, %arg2: i32) -> (i32, i32, i32) {
    %c0_i32 = arith.constant 0 : i32
    %c0_i32_0 = arith.constant 0 : i32
    return %arg1, %arg0, %c0_i32 : i32, i32, i32
  }
  func.func @transform_4(%arg0: i32, %arg1: i32, %arg2: i32) -> (i32, i32, i32) {
    %c0_i32 = arith.constant 0 : i32
    %c0_i32_0 = arith.constant 0 : i32
    return %arg1, %arg0, %c0_i32 : i32, i32, i32
  }
  func.func @transform_5(%arg0: i32, %arg1: i32, %arg2: i32) -> (i32, i32, i32) {
    %c0_i32 = arith.constant 0 : i32
    %c0_i32_0 = arith.constant 0 : i32
    return %arg1, %arg0, %c0_i32 : i32, i32, i32
  }
}

</mosaic_0001>

<llo_original>
// kernel: tpu_custom_call.1
$region0: #{tpu_custom_call.1}
  #allocation0 [shape = 'u32[]', space=smem, size = 0x4, offset = 0x4, fixed_abs, tag = 'smem constant byte address 0x4 - core index']
  #allocation1 [shape = 'u32[144,128]{1,0:T(1,128)}', space=vmem, size = 0x12000, scoped, tag = 'internal scratch']
  %s0 = inlined_call_operand.hbm [shape: f32[16,128], index: 0, kind: input, shape index: {}]
  %s1 = inlined_call_operand.hbm [shape: f32[16,128], index: 1, kind: input, shape index: {}]
  %s2 = inlined_call_operand.hbm [shape: f32[16,128], index: 2, kind: input, shape index: {}]
  %s3 = inlined_call_operand.hbm [shape: f32[1,16,128], index: 3, kind: output, shape index: {0}]
  %s4 = inlined_call_operand.hbm [shape: f32[1,16,128], index: 4, kind: output, shape index: {1}]
  %s5 = inlined_call_operand.hbm [shape: f32[1,16,128], index: 5, kind: output, shape index: {2}]
  %6 = xla_tuple %s3, %s4, %s5
  %s7 = sld [smem:[#allocation0]]
  $region54: #{tpu_custom_call.1} parent=0
    _
  %s9 = ssub.s32 1, %s7
  %s10 = scalar_select 0, %s9, %s7
  $region1: #{tpu_custom_call.1} parent=0
    #allocation2 [shape = 'u8[8192]{0}', space=vmem, size = 0x2000, scoped, tag = 'input window, operand 0, single buffered']
    #allocation3 [shape = 's32[1]{0}', space=sflag, size = 0x4, scoped, tag = 'scoped memory for tpu_custom_call.1']
    #allocation4 [shape = 's32[1]{0}', space=sflag, size = 0x4, scoped, tag = 'scoped memory for tpu_custom_call.1']
    #allocation5 [shape = 'u8[8192]{0}', space=vmem, size = 0x2000, scoped, tag = 'input window, operand 1, single buffered']
    #allocation6 [shape = 's32[1]{0}', space=sflag, size = 0x4, scoped, tag = 'scoped memory for tpu_custom_call.1']
    #allocation7 [shape = 'u8[8192]{0}', space=vmem, size = 0x2000, scoped, tag = 'input window, operand 2, single buffered']
    #allocation8 [shape = 'u8[8192]{0}', space=vmem, size = 0x2000, scoped, tag = 'output window, operand 0, single buffered']
    #allocation9 [shape = 'u8[8192]{0}', space=vmem, size = 0x2000, scoped, tag = 'output window, operand 1, single buffered']
    #allocation10 [shape = 's32[1]{0}', space=sflag, size = 0x4, scoped, tag = 'scoped memory for tpu_custom_call.1']
    #allocation11 [shape = 'u8[8192]{0}', space=vmem, size = 0x2000, scoped, tag = 'output window, operand 2, single buffered']
    %11 = vsyncpa [#allocation3], 0
    %12 = vsyncpa [#allocation6], 0
    %13 = vsyncpa [#allocation4], 0
    %14 = vsyncpa [#allocation10], 0
    // Predicated region
    $region2: #{tpu_custom_call.1} parent=1 // pred_check
      _
    $region3: #{tpu_custom_call.1} parent=1 // pred_check_branch
      %16 = sbr.rel (0) target = $region5
    $region4: #{tpu_custom_call.1} parent=1 // pred_region
      %s17 = sadd.s32 0, 0
      %s19 = ssub.s32 256, 256
      %20 = vsyncadd [#allocation3], %s19
      %s21 = smul.addr %s17, 128
      %s22 = scalar_lea.hbm %s0, %s21
      %s23 = sshll.u32 [#allocation2], 4
      %s24 = int_to_ptr.vmem [resolvable:$true] %s23
      %29 = dma.hbm_to_vmem [thread:$0]  %s22, 256, %s24, [#allocation3], 128, 128, 8
    $region5: #{tpu_custom_call.1} parent=1 // pred_fallthru
      _
    // Predicated region
    $region6: #{tpu_custom_call.1} parent=1 // pred_check
      _
    $region7: #{tpu_custom_call.1} parent=1 // pred_check_branch
      %31 = sbr.rel (0) target = $region9
    $region8: #{tpu_custom_call.1} parent=1 // pred_region
      %s32 = sadd.s32 0, 0
      %s34 = ssub.s32 256, 256
      %35 = vsyncadd [#allocation6], %s34
      %s36 = smul.addr %s32, 128
      %s37 = scalar_lea.hbm %s1, %s36
      %s38 = sshll.u32 [#allocation5], 4
      %s39 = int_to_ptr.vmem [resolvable:$true] %s38
      %44 = dma.hbm_to_vmem [thread:$0]  %s37, 256, %s39, [#allocation6], 128, 128, 8
    $region9: #{tpu_custom_call.1} parent=1 // pred_fallthru
      _
    // Predicated region
    $region10: #{tpu_custom_call.1} parent=1 // pred_check
      _
    $region11: #{tpu_custom_call.1} parent=1 // pred_check_branch
      %46 = sbr.rel (0) target = $region13
    $region12: #{tpu_custom_call.1} parent=1 // pred_region
      %s47 = sadd.s32 0, 0
      %s49 = ssub.s32 256, 256
      %50 = vsyncadd [#allocation6], %s49
      %s51 = smul.addr %s47, 128
      %s52 = scalar_lea.hbm %s2, %s51
      %s53 = sshll.u32 [#allocation7], 4
      %s54 = int_to_ptr.vmem [resolvable:$true] %s53
      %59 = dma.hbm_to_vmem [thread:$0]  %s52, 256, %s54, [#allocation6], 128, 128, 8
    $region13: #{tpu_custom_call.1} parent=1 // pred_fallthru
      _
    // Predicated region
    $region14: #{tpu_custom_call.1} parent=1 // pred_check
      _
    $region15: #{tpu_custom_call.1} parent=1 // pred_check_branch
      %61 = sbr.rel (0) target = $region17
    $region16: #{tpu_custom_call.1} parent=1 // pred_region
      %62 = dma.done [#allocation3], 256
    $region17: #{tpu_custom_call.1} parent=1 // pred_fallthru
      _
    // Predicated region
    $region18: #{tpu_custom_call.1} parent=1 // pred_check
      _
    $region19: #{tpu_custom_call.1} parent=1 // pred_check_branch
      %64 = sbr.rel (0) target = $region21
    $region20: #{tpu_custom_call.1} parent=1 // pred_region
      %65 = dma.done [#allocation6], 256
    $region21: #{tpu_custom_call.1} parent=1 // pred_fallthru
      _
    // Predicated region
    $region22: #{tpu_custom_call.1} parent=1 // pred_check
      _
    $region23: #{tpu_custom_call.1} parent=1 // pred_check_branch
      %67 = sbr.rel (0) target = $region25
    $region24: #{tpu_custom_call.1} parent=1 // pred_region
      %68 = dma.done [#allocation6], 256
    $region25: #{tpu_custom_call.1} parent=1 // pred_fallthru
      _
    %s69 = sadd.s32 0, 0
    %s70 = sadd.s32 0, 0
    %s71 = sadd.s32 0, 0
    %p72 = scmp.eq.s32.totalorder 0, 0
    // Predicated region
    $region26: #{tpu_custom_call.1} parent=1 // pred_check
      %p73 = pneg %p72
    $region27: #{tpu_custom_call.1} parent=1 // pred_check_branch
      %75 = sbr.rel (%p73) target = $region29
    $region28: #{tpu_custom_call.1} parent=1 // pred_region
      %76 = vst [vmem:[#allocation8] sm:$0xff] 0.0
      %77 = vst [vmem:[#allocation8 + $0x8] sm:$0xff] 0.0
      %78 = vst [vmem:[#allocation9] sm:$0xff] 0.0
      %79 = vst [vmem:[#allocation9 + $0x8] sm:$0xff] 0.0
      %80 = vst [vmem:[#allocation11] sm:$0xff] 0.0
      %81 = vst [vmem:[#allocation11 + $0x8] sm:$0xff] 0.0
    $region29: #{tpu_custom_call.1} parent=1 // pred_fallthru
      _
    %s82 = sadd.s32 0, 0
    %s83 = smul.u32 %s82, 128
    %s84 = ssub.s32 128, %s83
    %v85 = vlaneseq
    %v86 = vand.u32 %v85, 127
    %v87 = vld [vmem:[#allocation8] sm:$0xff]
    %v88 = vld [vmem:[#allocation8 + $0x8] sm:$0xff]
    %v89 = vld [vmem:[#allocation9] sm:$0xff]
    %v90 = vld [vmem:[#allocation9 + $0x8] sm:$0xff]
    %v91 = vld [vmem:[#allocation11] sm:$0xff]
    %v92 = vld [vmem:[#allocation11 + $0x8] sm:$0xff]
    %s93 = ssub.s32 %s84, 0
    %v94 = vstv %s93
    %vm95 = vcmp.lt.s32.totalorder %v86, %v94
    %v96 = vld [vmem:[#allocation2] sm:$0xff]
    %v97 = vld [vmem:[#allocation2 + $0x8] sm:$0xff]
    %v98 = vld [vmem:[#allocation5] sm:$0xff]
    %v99 = vld [vmem:[#allocation5 + $0x8] sm:$0xff]
    %v100 = vld [vmem:[#allocation7] sm:$0xff]
    %v101 = vld [vmem:[#allocation7 + $0x8] sm:$0xff]
    %v102 = vsel %vm95, %v96, 0.0
    %v103 = vsel %vm95, %v97, 0.0
    %v104 = vsel %vm95, %v98, 0.0
    %v105 = vsel %vm95, %v99, 0.0
    %v106 = vsel %vm95, %v100, 0.0
    %v107 = vsel %vm95, %v101, 0.0
    %v108 = vmul.f32 %v102, 0.5
    %v109 = vmul.f32 %v103, 0.5
    %v110 = vtanh.pop %v108
    %v111 = vtanh.pop %v109
    %v112 = vadd.f32 %v110, 1.0
    %v113 = vadd.f32 %v111, 1.0
    %v114 = vmul.f32 %v106, 0.5
    %v115 = vmul.f32 %v107, 0.5
    %v116 = vmul.f32 %v112, %v114
    %v117 = vmul.f32 %v113, %v115
    %v118 = vmul.f32 %v104, %v106
    %v119 = vmul.f32 %v105, %v107
    %v120 = vmul.f32 %v116, %v118
    %v121 = vmul.f32 %v117, %v119
    %v122 = vadd.f32 %v87, %v120
    %v123 = vadd.f32 %v88, %v121
    %v124 = vmul.f32 %v116, %v116
    %v125 = vmul.f32 %v117, %v117
    %v126 = vadd.f32 %v89, %v124
    %v127 = vadd.f32 %v90, %v125
    %v128 = vmul.f32 %v118, %v118
    %v129 = vmul.f32 %v119, %v119
    %v130 = vadd.f32 %v91, %v128
    %v131 = vadd.f32 %v92, %v129
    %132 = vst [vmem:[#allocation8] sm:$0xff] %v122
    %133 = vst [vmem:[#allocation8 + $0x8] sm:$0xff] %v123
    %134 = vst [vmem:[#allocation9] sm:$0xff] %v126
    %135 = vst [vmem:[#allocation9 + $0x8] sm:$0xff] %v127
    %136 = vst [vmem:[#allocation11] sm:$0xff] %v130
    %137 = vst [vmem:[#allocation11 + $0x8] sm:$0xff] %v131
    // Predicated region
    $region30: #{tpu_custom_call.1} parent=1 // pred_check
      _
    $region31: #{tpu_custom_call.1} parent=1 // pred_check_branch
      %139 = sbr.rel (0) target = $region33
    $region32: #{tpu_custom_call.1} parent=1 // pred_region
      %s141 = ssub.s32 256, 256
      %142 = vsyncadd [#allocation4], %s141
      %s143 = sshll.u32 [#allocation8], 4
      %s144 = int_to_ptr.vmem [resolvable:$true] %s143
      %149 = dma.vmem_to_hbm [thread:$0]  %s144, 256, %s3, [#allocation4], 128, 128, 8
    $region33: #{tpu_custom_call.1} parent=1 // pred_fallthru
      _
    // Predicated region
    $region34: #{tpu_custom_call.1} parent=1 // pred_check
      _
    $region35: #{tpu_custom_call.1} parent=1 // pred_check_branch
      %151 = sbr.rel (0) target = $region37
    $region36: #{tpu_custom_call.1} parent=1 // pred_region
      %s153 = ssub.s32 256, 256
      %154 = vsyncadd [#allocation10], %s153
      %s155 = sshll.u32 [#allocation9], 4
      %s156 = int_to_ptr.vmem [resolvable:$true] %s155
      %161 = dma.vmem_to_hbm [thread:$0]  %s156, 256, %s4, [#allocation10], 128, 128, 8
    $region37: #{tpu_custom_call.1} parent=1 // pred_fallthru
      _
    // Predicated region
    $region38: #{tpu_custom_call.1} parent=1 // pred_check
      _
    $region39: #{tpu_custom_call.1} parent=1 // pred_check_branch
      %163 = sbr.rel (0) target = $region41
    $region40: #{tpu_custom_call.1} parent=1 // pred_region
      %s165 = ssub.s32 256, 256
      %166 = vsyncadd [#allocation10], %s165
      %s167 = sshll.u32 [#allocation11], 4
      %s168 = int_to_ptr.vmem [resolvable:$true] %s167
      %173 = dma.vmem_to_hbm [thread:$0]  %s168, 256, %s5, [#allocation10], 128, 128, 8
    $region41: #{tpu_custom_call.1} parent=1 // pred_fallthru
      _
    // Predicated region
    $region42: #{tpu_custom_call.1} parent=1 // pred_check
      _
    $region43: #{tpu_custom_call.1} parent=1 // pred_check_branch
      %175 = sbr.rel (0) target = $region45
    $region44: #{tpu_custom_call.1} parent=1 // pred_region
      %176 = dma.done [#allocation4], 256
    $region45: #{tpu_custom_call.1} parent=1 // pred_fallthru
      _
    // Predicated region
    $region46: #{tpu_custom_call.1} parent=1 // pred_check
      _
    $region47: #{tpu_custom_call.1} parent=1 // pred_check_branch
      %178 = sbr.rel (0) target = $region49
    $region48: #{tpu_custom_call.1} parent=1 // pred_region
      %179 = dma.done [#allocation10], 256
    $region49: #{tpu_custom_call.1} parent=1 // pred_fallthru
      _
    // Predicated region
    $region50: #{tpu_custom_call.1} parent=1 // pred_check
      _
    $region51: #{tpu_custom_call.1} parent=1 // pred_check_branch
      %181 = sbr.rel (0) target = $region53
    $region52: #{tpu_custom_call.1} parent=1 // pred_region
      %182 = dma.done [#allocation10], 256
    $region53: #{tpu_custom_call.1} parent=1 // pred_fallthru
      _
    %183 = vsyncpa [#allocation3], 1
    %184 = vsyncpa [#allocation6], 1
    %185 = vsyncpa [#allocation4], 1
    %186 = vsyncpa [#allocation10], 1

</llo_original>
